<compile_context>
chip_gen: v7x
topology: tpu7x:2x2x1
jax: 0.10.0
libtpu: 0.0.40
codegen_flags: <defaults>
</compile_context>

<pallas_src>
import jax
import jax.numpy as jnp
from jax import lax
from jax.experimental import pallas as pl
from jax.experimental.pallas import tpu as pltpu

POOL_K = 4  # maxpool kernel_size
POOL_S = 4  # maxpool stride


def _make_kernel(H, W, C2, P1H, P1W, H2, W2s, P2H, P2W, F, OUT):
    H1, W1 = H - 1, W - 1      # conv1 (2x2, stride 1, valid) output spatial size
    SW = P1W                   # channel-stripe width of the packed conv2 layout
    WL = C2 * SW - 1           # packed conv2 width actually used

    def kernel(x_ref, w1b1_ref, slab_ref, out_ref):
        x = x_ref[0]                                          # (TB, H, W)

        # ---- conv1 (1->1, 2x2) + bias + ReLU : four shifted multiply-adds ----
        y1 = (w1b1_ref[0] * x[:, 0:H1, 0:W1]
              + w1b1_ref[1] * x[:, 0:H1, 1:W1 + 1]
              + w1b1_ref[2] * x[:, 1:H1 + 1, 0:W1]
              + w1b1_ref[3] * x[:, 1:H1 + 1, 1:W1 + 1]
              + w1b1_ref[4])
        y1 = jnp.maximum(y1, 0.0)                             # (TB, H1, W1)

        # ---- maxpool-1 width: shift-max tree + one compaction concat ----
        t1 = jnp.maximum(y1[:, :, 0:W1 - 1], y1[:, :, 1:W1])
        t2 = jnp.maximum(t1[:, :, 0:W1 - 3], t1[:, :, 2:W1 - 1])   # max over 4 lanes
        pw = jnp.concatenate(
            [t2[:, :, POOL_S * j:POOL_S * j + 1] for j in range(P1W)],
            axis=2)                                           # (TB, H1, P1W)

        # ---- maxpool-1 height: shift-max tree + compaction ----
        s1 = jnp.maximum(pw[:, 0:H1 - 1, :], pw[:, 1:H1, :])
        s2 = jnp.maximum(s1[:, 0:H1 - 3, :], s1[:, 2:H1 - 1, :])
        p1 = jnp.concatenate(
            [s2[:, POOL_S * i:POOL_S * i + 1, :] for i in range(P1H)],
            axis=1)                                           # (TB, P1H, P1W)

        # ---- conv2 (1->C2, 2x2): ONE C2x lane replication, then shifted views ----
        p1t = jnp.concatenate([p1] * C2, axis=2)              # (TB, P1H, C2*SW)
        a = p1t[:, 0:H2, 0:WL]            # lane cc*SW+j -> p1[i,   j  ]
        b = p1t[:, 0:H2, 1:WL + 1]        # lane cc*SW+j -> p1[i,   j+1]
        c = p1t[:, 1:H2 + 1, 0:WL]        # lane cc*SW+j -> p1[i+1, j  ]
        d = p1t[:, 1:H2 + 1, 1:WL + 1]    # lane cc*SW+j -> p1[i+1, j+1]

        slab = slab_ref[...]                                  # one constant slab
        wdt = slab[0:F, 0:OUT]                                # (F, OUT) dense W (permuted)
        w2l = slab[F:F + 5, 0:WL]                             # (5, WL)  conv2 taps + bias
        bdr = slab[F + 5:F + 6, 0:OUT]                        # (1, OUT) dense bias

        z = (a * w2l[0:1, :] + b * w2l[1:2, :]
             + c * w2l[2:3, :] + d * w2l[3:4, :] + w2l[4:5, :])
        z = jnp.maximum(z, 0.0)                               # (TB, H2, WL)

        # ---- maxpool-2 width: tree + compaction at lanes cc*SW + 4*jw ----
        u1 = jnp.maximum(z[:, :, 0:WL - 1], z[:, :, 1:WL])
        u2 = jnp.maximum(u1[:, :, 0:WL - 3], u1[:, :, 2:WL - 1])
        zw = jnp.concatenate(
            [u2[:, :, cc * SW + POOL_S * jw: cc * SW + POOL_S * jw + 1]
             for cc in range(C2) for jw in range(P2W)],
            axis=2)                                           # (TB, H2, C2*P2W)

        # ---- maxpool-2 height: tree; features live at rows 4*i ----
        v1 = jnp.maximum(zw[:, 0:H2 - 1, :], zw[:, 1:H2, :])
        v2 = jnp.maximum(v1[:, 0:H2 - 3, :], v1[:, 2:H2 - 1, :])
        feat = jnp.concatenate(
            [v2[:, POOL_S * i, :] for i in range(P2H)], axis=1)   # (TB, F)
        # feature index = i*(C2*P2W) + cc*P2W + jw  (dense W is permuted to match)

        # ---- "dense" 1x1 conv: one batched MXU dot + bias, one store ----
        res = jnp.dot(feat, wdt, preferred_element_type=jnp.float32) + bdr
        out_ref[0] = res.astype(out_ref.dtype)                # out_ref: (1, TB, OUT)

    return kernel


def _pick_grid(N):
    """One fat step on single-TC parts (v5e/v6e); two parallel steps on
    multi-core parts (v7x / v4 / v5p) so each core gets half the batch."""
    kind = ""
    try:
        kind = jax.devices()[0].device_kind.lower()
    except Exception:
        pass
    multi_core = any(tag in kind for tag in ("v7", "7x", "v4", "v5p"))
    G = 2 if (multi_core and N >= 2) else 1
    TB = -(-N // G)
    return G, TB


def model_forward(x, w1, b1, w2, b2, wd, bd):
    """x: (N, 1, H, W) NCHW float32. Returns (N, OUT)."""
    N, Cin, H, W = x.shape
    assert Cin == 1
    C2 = w2.shape[0]
    H1, W1 = H - 1, W - 1
    P1H = (H1 - POOL_K) // POOL_S + 1
    P1W = (W1 - POOL_K) // POOL_S + 1
    H2, W2s = P1H - 1, P1W - 1
    P2H = (H2 - POOL_K) // POOL_S + 1
    P2W = (W2s - POOL_K) // POOL_S + 1
    F = P2H * P2W * C2
    OUT = wd.shape[0]
    assert wd.size == OUT * F

    kernel = _make_kernel(H, W, C2, P1H, P1W, H2, W2s, P2H, P2W, F, OUT)

    # --- batch tiling: G grid steps of TB images each (pad batch if needed) ---
    G, TB = _pick_grid(N)
    Npad = G * TB
    x3 = x[:, 0].astype(jnp.float32)                      # (N, H, W)
    if Npad != N:
        x3 = jnp.concatenate(
            [x3, jnp.zeros((Npad - N, H, W), jnp.float32)], axis=0)
    x4 = x3.reshape(G, TB, H, W)

    # --- conv1 weights + bias as SMEM scalars (one small operand) ---
    w1b1 = jnp.concatenate(
        [w1.reshape(-1), b1.reshape(-1)]).astype(jnp.float32)         # (5,)

    # --- conv2 weights/bias lane-packed with stripe width SW = P1W ---
    SW = P1W
    SLABW = C2 * SW
    w2flat = w2.reshape(C2, 4).astype(jnp.float32)
    w2lanes = jnp.stack(
        [jnp.repeat(w2flat[:, t], SW) for t in range(4)]
        + [jnp.repeat(b2.reshape(-1).astype(jnp.float32), SW)],
        axis=0)                                                        # (5, SLABW)

    # --- dense weights permuted from NHWC-flatten order (i*P2W+jw)*C2+c to the
    #     kernel's (i, c, jw) feature order ---
    wd_mat = wd.reshape(OUT, F).T.astype(jnp.float32)                  # (F, OUT)
    perm = jnp.array(
        [(i * P2W + jw) * C2 + c
         for i in range(P2H) for c in range(C2) for jw in range(P2W)],
        dtype=jnp.int32)
    wdt = wd_mat[perm, :]

    # --- one constant slab = one DMA: rows [0,F)=dense W, [F,F+5)=conv2 lanes,
    #     row F+5 = dense bias ---
    n_rows = F + 5 + 1
    slab = jnp.zeros((n_rows, SLABW), jnp.float32)
    slab = slab.at[0:F, 0:OUT].set(wdt)
    slab = slab.at[F:F + 5, :].set(w2lanes)
    slab = slab.at[F + 5, 0:OUT].set(bd.reshape(-1).astype(jnp.float32))

    flops_per_img = (H1 * W1 * 9 + 4 * H1 * W1
                     + H2 * SLABW * 9 + 2 * F * OUT)
    cost = pl.CostEstimate(
        flops=Npad * flops_per_img,
        transcendentals=0,
        bytes_accessed=Npad * (H * W + OUT) * 4 + int(slab.size) * 4 + 5 * 4)

    out = pl.pallas_call(
        kernel,
        grid=(G,),
        out_shape=jax.ShapeDtypeStruct((G, TB, OUT), jnp.float32),
        in_specs=[
            pl.BlockSpec((1, TB, H, W), lambda i: (i, 0, 0, 0)),        # batch tile
            pl.BlockSpec(memory_space=pltpu.MemorySpace.SMEM),          # conv1 w+b
            pl.BlockSpec((n_rows, SLABW), lambda i: (0, 0)),            # constant slab
        ],
        out_specs=pl.BlockSpec((1, TB, OUT), lambda i: (i, 0, 0)),
        compiler_params=pltpu.CompilerParams(
            dimension_semantics=("parallel",)),
        cost_estimate=cost,
    )(x4, w1b1, slab)
    return out.reshape(Npad, OUT)[:N]


def reference(x, w1, b1, w2, b2, wd, bd):
    """Plain-JAX reference of the PyTorch forward pass (NCHW)."""
    dn = ('NCHW', 'OIHW', 'NCHW')
    y = lax.conv_general_dilated(x, w1, (1, 1), 'VALID', dimension_numbers=dn)
    y = jnp.maximum(y + b1.reshape(1, -1, 1, 1), 0.0)
    y = lax.reduce_window(y, -jnp.inf, lax.max, (1, 1, 4, 4), (1, 1, 4, 4), 'VALID')
    z = lax.conv_general_dilated(y, w2, (1, 1), 'VALID', dimension_numbers=dn)
    z = jnp.maximum(z + b2.reshape(1, -1, 1, 1), 0.0)
    z = lax.reduce_window(z, -jnp.inf, lax.max, (1, 1, 4, 4), (1, 1, 4, 4), 'VALID')
    t = jnp.transpose(z, (0, 2, 3, 1)).reshape(z.shape[0], -1)
    return t @ wd.reshape(wd.shape[0], -1).T + bd.reshape(1, -1)


if __name__ == "__main__":
    key = jax.random.PRNGKey(0)
    kx, k1, k2, k3, k4, k5, k6 = jax.random.split(key, 7)

    # Small shapes consistent with the module: 37x37 single-channel image.
    N, H, W = 2, 37, 37
    x = jax.random.normal(kx, (N, 1, H, W), jnp.float32)

    # Deterministic parameter init (PyTorch-style uniform +-1/sqrt(fan_in)).
    b_c = 1.0 / jnp.sqrt(4.0)                 # 2x2 conv, 1 input channel
    w1 = jax.random.uniform(k1, (1, 1, 2, 2), jnp.float32, -b_c, b_c)
    b1 = jax.random.uniform(k2, (1,), jnp.float32, -b_c, b_c)
    w2 = jax.random.uniform(k3, (8, 1, 2, 2), jnp.float32, -b_c, b_c)
    b2 = jax.random.uniform(k4, (8,), jnp.float32, -b_c, b_c)

    F = 2 * 2 * 8                              # pooled 2x2 spatial x 8 channels
    b_d = 1.0 / jnp.sqrt(float(F))
    wd = jax.random.uniform(k5, (10, F, 1, 1), jnp.float32, -b_d, b_d)
    bd = jax.random.uniform(k6, (10,), jnp.float32, -b_d, b_d)

    out = model_forward(x, w1, b1, w2, b2, wd, bd)
    out = jax.block_until_ready(out)
    ref = reference(x, w1, b1, w2, b2, wd, bd)

    assert out.shape == (N, 10), out.shape
    assert jnp.allclose(out, ref, atol=1e-4, rtol=1e-4), (out, ref)
    print("KERNEL_OK")
</pallas_src>

<mosaic_0001>
module attributes {stable_mosaic.version = 11 : i64} {
  func.func @kernel(%arg0: i32, %arg1: memref<1x2x37x37xf32, #tpu.memory_space<vmem>>, %arg2: memref<5xf32, #tpu.memory_space<smem>>, %arg3: memref<38x72xf32, #tpu.memory_space<vmem>>, %arg4: memref<1x2x10xf32, #tpu.memory_space<vmem>>) attributes {dimension_semantics = [#tpu.dimension_semantics<parallel>], iteration_bounds = array<i64: 1>, scalar_prefetch = 0 : i64, scratch_operands = 0 : i64, tpu.core_type = #tpu.core_type<tc>, window_params = [{transform_indices = @transform_0, window_bounds = array<i64: 1, 2, 37, 37>}, {transform_indices = @transform_1, window_bounds = array<i64: 5>}, {pipeline_mode = #tpu.pipeline_mode<synchronous>, transform_indices = @transform_2, window_bounds = array<i64: 38, 72>}, {transform_indices = @transform_3, window_bounds = array<i64: 1, 2, 10>}]} {
    %c0 = arith.constant 0 : index
    %c0_0 = arith.constant 0 : index
    %c0_1 = arith.constant 0 : index
    %c0_2 = arith.constant 0 : index
    %0 = vector.load %arg1[%c0, %c0_0, %c0_1, %c0_2] : memref<1x2x37x37xf32, #tpu.memory_space<vmem>>, vector<1x2x37x37xf32>
    %1 = vector.shape_cast %0 : vector<1x2x37x37xf32> to vector<2x37x37xf32>
    %c0_3 = arith.constant 0 : index
    %2 = memref.load %arg2[%c0_3] : memref<5xf32, #tpu.memory_space<smem>>
    %3 = vector.extract_strided_slice %1 {offsets = [0, 0, 0], sizes = [2, 36, 36], strides = [1, 1, 1]} : vector<2x37x37xf32> to vector<2x36x36xf32>
    %4 = vector.broadcast %2 : f32 to vector<2x36x36xf32>
    %5 = arith.mulf %4, %3 : vector<2x36x36xf32>
    %c1 = arith.constant 1 : index
    %6 = memref.load %arg2[%c1] : memref<5xf32, #tpu.memory_space<smem>>
    %7 = vector.extract_strided_slice %1 {offsets = [0, 0, 1], sizes = [2, 36, 36], strides = [1, 1, 1]} : vector<2x37x37xf32> to vector<2x36x36xf32>
    %8 = vector.broadcast %6 : f32 to vector<2x36x36xf32>
    %9 = arith.mulf %8, %7 : vector<2x36x36xf32>
    %10 = arith.addf %5, %9 : vector<2x36x36xf32>
    %c2 = arith.constant 2 : index
    %11 = memref.load %arg2[%c2] : memref<5xf32, #tpu.memory_space<smem>>
    %12 = vector.extract_strided_slice %1 {offsets = [0, 1, 0], sizes = [2, 36, 36], strides = [1, 1, 1]} : vector<2x37x37xf32> to vector<2x36x36xf32>
    %13 = vector.broadcast %11 : f32 to vector<2x36x36xf32>
    %14 = arith.mulf %13, %12 : vector<2x36x36xf32>
    %15 = arith.addf %10, %14 : vector<2x36x36xf32>
    %c3 = arith.constant 3 : index
    %16 = memref.load %arg2[%c3] : memref<5xf32, #tpu.memory_space<smem>>
    %17 = vector.extract_strided_slice %1 {offsets = [0, 1, 1], sizes = [2, 36, 36], strides = [1, 1, 1]} : vector<2x37x37xf32> to vector<2x36x36xf32>
    %18 = vector.broadcast %16 : f32 to vector<2x36x36xf32>
    %19 = arith.mulf %18, %17 : vector<2x36x36xf32>
    %20 = arith.addf %15, %19 : vector<2x36x36xf32>
    %c4 = arith.constant 4 : index
    %21 = memref.load %arg2[%c4] : memref<5xf32, #tpu.memory_space<smem>>
    %22 = vector.broadcast %21 : f32 to vector<2x36x36xf32>
    %23 = arith.addf %20, %22 : vector<2x36x36xf32>
    %cst = arith.constant 0.000000e+00 : f32
    %24 = vector.broadcast %cst : f32 to vector<2x36x36xf32>
    %25 = arith.maximumf %23, %24 : vector<2x36x36xf32>
    %26 = vector.extract_strided_slice %25 {offsets = [0, 0, 0], sizes = [2, 36, 35], strides = [1, 1, 1]} : vector<2x36x36xf32> to vector<2x36x35xf32>
    %27 = vector.extract_strided_slice %25 {offsets = [0, 0, 1], sizes = [2, 36, 35], strides = [1, 1, 1]} : vector<2x36x36xf32> to vector<2x36x35xf32>
    %28 = arith.maximumf %26, %27 : vector<2x36x35xf32>
    %29 = vector.extract_strided_slice %28 {offsets = [0, 0, 0], sizes = [2, 36, 33], strides = [1, 1, 1]} : vector<2x36x35xf32> to vector<2x36x33xf32>
    %30 = vector.extract_strided_slice %28 {offsets = [0, 0, 2], sizes = [2, 36, 33], strides = [1, 1, 1]} : vector<2x36x35xf32> to vector<2x36x33xf32>
    %31 = arith.maximumf %29, %30 : vector<2x36x33xf32>
    %32 = vector.extract_strided_slice %31 {offsets = [0, 0, 0], sizes = [2, 36, 1], strides = [1, 1, 1]} : vector<2x36x33xf32> to vector<2x36x1xf32>
    %33 = vector.extract_strided_slice %31 {offsets = [0, 0, 4], sizes = [2, 36, 1], strides = [1, 1, 1]} : vector<2x36x33xf32> to vector<2x36x1xf32>
    %34 = vector.extract_strided_slice %31 {offsets = [0, 0, 8], sizes = [2, 36, 1], strides = [1, 1, 1]} : vector<2x36x33xf32> to vector<2x36x1xf32>
    %35 = vector.extract_strided_slice %31 {offsets = [0, 0, 12], sizes = [2, 36, 1], strides = [1, 1, 1]} : vector<2x36x33xf32> to vector<2x36x1xf32>
    %36 = vector.extract_strided_slice %31 {offsets = [0, 0, 16], sizes = [2, 36, 1], strides = [1, 1, 1]} : vector<2x36x33xf32> to vector<2x36x1xf32>
    %37 = vector.extract_strided_slice %31 {offsets = [0, 0, 20], sizes = [2, 36, 1], strides = [1, 1, 1]} : vector<2x36x33xf32> to vector<2x36x1xf32>
    %38 = vector.extract_strided_slice %31 {offsets = [0, 0, 24], sizes = [2, 36, 1], strides = [1, 1, 1]} : vector<2x36x33xf32> to vector<2x36x1xf32>
    %39 = vector.extract_strided_slice %31 {offsets = [0, 0, 28], sizes = [2, 36, 1], strides = [1, 1, 1]} : vector<2x36x33xf32> to vector<2x36x1xf32>
    %40 = vector.extract_strided_slice %31 {offsets = [0, 0, 32], sizes = [2, 36, 1], strides = [1, 1, 1]} : vector<2x36x33xf32> to vector<2x36x1xf32>
    %41 = tpu.concatenate %32, %33, %34, %35, %36, %37, %38, %39, %40 in 2 : vector<2x36x1xf32>, vector<2x36x1xf32>, vector<2x36x1xf32>, vector<2x36x1xf32>, vector<2x36x1xf32>, vector<2x36x1xf32>, vector<2x36x1xf32>, vector<2x36x1xf32>, vector<2x36x1xf32> -> vector<2x36x9xf32>
    %42 = vector.extract_strided_slice %41 {offsets = [0, 0, 0], sizes = [2, 35, 9], strides = [1, 1, 1]} : vector<2x36x9xf32> to vector<2x35x9xf32>
    %43 = vector.extract_strided_slice %41 {offsets = [0, 1, 0], sizes = [2, 35, 9], strides = [1, 1, 1]} : vector<2x36x9xf32> to vector<2x35x9xf32>
    %44 = arith.maximumf %42, %43 : vector<2x35x9xf32>
    %45 = vector.extract_strided_slice %44 {offsets = [0, 0, 0], sizes = [2, 33, 9], strides = [1, 1, 1]} : vector<2x35x9xf32> to vector<2x33x9xf32>
    %46 = vector.extract_strided_slice %44 {offsets = [0, 2, 0], sizes = [2, 33, 9], strides = [1, 1, 1]} : vector<2x35x9xf32> to vector<2x33x9xf32>
    %47 = arith.maximumf %45, %46 : vector<2x33x9xf32>
    %48 = vector.extract_strided_slice %47 {offsets = [0, 0, 0], sizes = [2, 1, 9], strides = [1, 1, 1]} : vector<2x33x9xf32> to vector<2x1x9xf32>
    %49 = vector.extract_strided_slice %47 {offsets = [0, 4, 0], sizes = [2, 1, 9], strides = [1, 1, 1]} : vector<2x33x9xf32> to vector<2x1x9xf32>
    %50 = vector.extract_strided_slice %47 {offsets = [0, 8, 0], sizes = [2, 1, 9], strides = [1, 1, 1]} : vector<2x33x9xf32> to vector<2x1x9xf32>
    %51 = vector.extract_strided_slice %47 {offsets = [0, 12, 0], sizes = [2, 1, 9], strides = [1, 1, 1]} : vector<2x33x9xf32> to vector<2x1x9xf32>
    %52 = vector.extract_strided_slice %47 {offsets = [0, 16, 0], sizes = [2, 1, 9], strides = [1, 1, 1]} : vector<2x33x9xf32> to vector<2x1x9xf32>
    %53 = vector.extract_strided_slice %47 {offsets = [0, 20, 0], sizes = [2, 1, 9], strides = [1, 1, 1]} : vector<2x33x9xf32> to vector<2x1x9xf32>
    %54 = vector.extract_strided_slice %47 {offsets = [0, 24, 0], sizes = [2, 1, 9], strides = [1, 1, 1]} : vector<2x33x9xf32> to vector<2x1x9xf32>
    %55 = vector.extract_strided_slice %47 {offsets = [0, 28, 0], sizes = [2, 1, 9], strides = [1, 1, 1]} : vector<2x33x9xf32> to vector<2x1x9xf32>
    %56 = vector.extract_strided_slice %47 {offsets = [0, 32, 0], sizes = [2, 1, 9], strides = [1, 1, 1]} : vector<2x33x9xf32> to vector<2x1x9xf32>
    %57 = tpu.concatenate %48, %49, %50, %51, %52, %53, %54, %55, %56 in 1 : vector<2x1x9xf32>, vector<2x1x9xf32>, vector<2x1x9xf32>, vector<2x1x9xf32>, vector<2x1x9xf32>, vector<2x1x9xf32>, vector<2x1x9xf32>, vector<2x1x9xf32>, vector<2x1x9xf32> -> vector<2x9x9xf32>
    %58 = tpu.concatenate %57, %57, %57, %57, %57, %57, %57, %57 in 2 : vector<2x9x9xf32>, vector<2x9x9xf32>, vector<2x9x9xf32>, vector<2x9x9xf32>, vector<2x9x9xf32>, vector<2x9x9xf32>, vector<2x9x9xf32>, vector<2x9x9xf32> -> vector<2x9x72xf32>
    %59 = vector.extract_strided_slice %58 {offsets = [0, 0, 0], sizes = [2, 8, 71], strides = [1, 1, 1]} : vector<2x9x72xf32> to vector<2x8x71xf32>
    %60 = vector.extract_strided_slice %58 {offsets = [0, 0, 1], sizes = [2, 8, 71], strides = [1, 1, 1]} : vector<2x9x72xf32> to vector<2x8x71xf32>
    %61 = vector.extract_strided_slice %58 {offsets = [0, 1, 0], sizes = [2, 8, 71], strides = [1, 1, 1]} : vector<2x9x72xf32> to vector<2x8x71xf32>
    %62 = vector.extract_strided_slice %58 {offsets = [0, 1, 1], sizes = [2, 8, 71], strides = [1, 1, 1]} : vector<2x9x72xf32> to vector<2x8x71xf32>
    %c0_4 = arith.constant 0 : index
    %c0_5 = arith.constant 0 : index
    %63 = vector.load %arg3[%c0_4, %c0_5] : memref<38x72xf32, #tpu.memory_space<vmem>>, vector<38x72xf32>
    %64 = vector.extract_strided_slice %63 {offsets = [0, 0], sizes = [32, 10], strides = [1, 1]} : vector<38x72xf32> to vector<32x10xf32>
    %65 = vector.extract_strided_slice %63 {offsets = [32, 0], sizes = [5, 71], strides = [1, 1]} : vector<38x72xf32> to vector<5x71xf32>
    %66 = vector.extract_strided_slice %63 {offsets = [37, 0], sizes = [1, 10], strides = [1, 1]} : vector<38x72xf32> to vector<1x10xf32>
    %67 = vector.extract_strided_slice %65 {offsets = [0, 0], sizes = [1, 71], strides = [1, 1]} : vector<5x71xf32> to vector<1x71xf32>
    %68 = vector.shape_cast %67 : vector<1x71xf32> to vector<1x1x71xf32>
    %69 = vector.broadcast %68 : vector<1x1x71xf32> to vector<2x8x71xf32>
    %70 = arith.mulf %59, %69 : vector<2x8x71xf32>
    %71 = vector.extract_strided_slice %65 {offsets = [1, 0], sizes = [1, 71], strides = [1, 1]} : vector<5x71xf32> to vector<1x71xf32>
    %72 = vector.shape_cast %71 : vector<1x71xf32> to vector<1x1x71xf32>
    %73 = vector.broadcast %72 : vector<1x1x71xf32> to vector<2x8x71xf32>
    %74 = arith.mulf %60, %73 : vector<2x8x71xf32>
    %75 = arith.addf %70, %74 : vector<2x8x71xf32>
    %76 = vector.extract_strided_slice %65 {offsets = [2, 0], sizes = [1, 71], strides = [1, 1]} : vector<5x71xf32> to vector<1x71xf32>
    %77 = vector.shape_cast %76 : vector<1x71xf32> to vector<1x1x71xf32>
    %78 = vector.broadcast %77 : vector<1x1x71xf32> to vector<2x8x71xf32>
    %79 = arith.mulf %61, %78 : vector<2x8x71xf32>
    %80 = arith.addf %75, %79 : vector<2x8x71xf32>
    %81 = vector.extract_strided_slice %65 {offsets = [3, 0], sizes = [1, 71], strides = [1, 1]} : vector<5x71xf32> to vector<1x71xf32>
    %82 = vector.shape_cast %81 : vector<1x71xf32> to vector<1x1x71xf32>
    %83 = vector.broadcast %82 : vector<1x1x71xf32> to vector<2x8x71xf32>
    %84 = arith.mulf %62, %83 : vector<2x8x71xf32>
    %85 = arith.addf %80, %84 : vector<2x8x71xf32>
    %86 = vector.extract_strided_slice %65 {offsets = [4, 0], sizes = [1, 71], strides = [1, 1]} : vector<5x71xf32> to vector<1x71xf32>
    %87 = vector.shape_cast %86 : vector<1x71xf32> to vector<1x1x71xf32>
    %88 = vector.broadcast %87 : vector<1x1x71xf32> to vector<2x8x71xf32>
    %89 = arith.addf %85, %88 : vector<2x8x71xf32>
    %cst_6 = arith.constant 0.000000e+00 : f32
    %90 = vector.broadcast %cst_6 : f32 to vector<2x8x71xf32>
    %91 = arith.maximumf %89, %90 : vector<2x8x71xf32>
    %92 = vector.extract_strided_slice %91 {offsets = [0, 0, 0], sizes = [2, 8, 70], strides = [1, 1, 1]} : vector<2x8x71xf32> to vector<2x8x70xf32>
    %93 = vector.extract_strided_slice %91 {offsets = [0, 0, 1], sizes = [2, 8, 70], strides = [1, 1, 1]} : vector<2x8x71xf32> to vector<2x8x70xf32>
    %94 = arith.maximumf %92, %93 : vector<2x8x70xf32>
    %95 = vector.extract_strided_slice %94 {offsets = [0, 0, 0], sizes = [2, 8, 68], strides = [1, 1, 1]} : vector<2x8x70xf32> to vector<2x8x68xf32>
    %96 = vector.extract_strided_slice %94 {offsets = [0, 0, 2], sizes = [2, 8, 68], strides = [1, 1, 1]} : vector<2x8x70xf32> to vector<2x8x68xf32>
    %97 = arith.maximumf %95, %96 : vector<2x8x68xf32>
    %98 = vector.extract_strided_slice %97 {offsets = [0, 0, 0], sizes = [2, 8, 1], strides = [1, 1, 1]} : vector<2x8x68xf32> to vector<2x8x1xf32>
    %99 = vector.extract_strided_slice %97 {offsets = [0, 0, 4], sizes = [2, 8, 1], strides = [1, 1, 1]} : vector<2x8x68xf32> to vector<2x8x1xf32>
    %100 = vector.extract_strided_slice %97 {offsets = [0, 0, 9], sizes = [2, 8, 1], strides = [1, 1, 1]} : vector<2x8x68xf32> to vector<2x8x1xf32>
    %101 = vector.extract_strided_slice %97 {offsets = [0, 0, 13], sizes = [2, 8, 1], strides = [1, 1, 1]} : vector<2x8x68xf32> to vector<2x8x1xf32>
    %102 = vector.extract_strided_slice %97 {offsets = [0, 0, 18], sizes = [2, 8, 1], strides = [1, 1, 1]} : vector<2x8x68xf32> to vector<2x8x1xf32>
    %103 = vector.extract_strided_slice %97 {offsets = [0, 0, 22], sizes = [2, 8, 1], strides = [1, 1, 1]} : vector<2x8x68xf32> to vector<2x8x1xf32>
    %104 = vector.extract_strided_slice %97 {offsets = [0, 0, 27], sizes = [2, 8, 1], strides = [1, 1, 1]} : vector<2x8x68xf32> to vector<2x8x1xf32>
    %105 = vector.extract_strided_slice %97 {offsets = [0, 0, 31], sizes = [2, 8, 1], strides = [1, 1, 1]} : vector<2x8x68xf32> to vector<2x8x1xf32>
    %106 = vector.extract_strided_slice %97 {offsets = [0, 0, 36], sizes = [2, 8, 1], strides = [1, 1, 1]} : vector<2x8x68xf32> to vector<2x8x1xf32>
    %107 = vector.extract_strided_slice %97 {offsets = [0, 0, 40], sizes = [2, 8, 1], strides = [1, 1, 1]} : vector<2x8x68xf32> to vector<2x8x1xf32>
    %108 = vector.extract_strided_slice %97 {offsets = [0, 0, 45], sizes = [2, 8, 1], strides = [1, 1, 1]} : vector<2x8x68xf32> to vector<2x8x1xf32>
    %109 = vector.extract_strided_slice %97 {offsets = [0, 0, 49], sizes = [2, 8, 1], strides = [1, 1, 1]} : vector<2x8x68xf32> to vector<2x8x1xf32>
    %110 = vector.extract_strided_slice %97 {offsets = [0, 0, 54], sizes = [2, 8, 1], strides = [1, 1, 1]} : vector<2x8x68xf32> to vector<2x8x1xf32>
    %111 = vector.extract_strided_slice %97 {offsets = [0, 0, 58], sizes = [2, 8, 1], strides = [1, 1, 1]} : vector<2x8x68xf32> to vector<2x8x1xf32>
    %112 = vector.extract_strided_slice %97 {offsets = [0, 0, 63], sizes = [2, 8, 1], strides = [1, 1, 1]} : vector<2x8x68xf32> to vector<2x8x1xf32>
    %113 = vector.extract_strided_slice %97 {offsets = [0, 0, 67], sizes = [2, 8, 1], strides = [1, 1, 1]} : vector<2x8x68xf32> to vector<2x8x1xf32>
    %114 = tpu.concatenate %98, %99, %100, %101, %102, %103, %104, %105, %106, %107, %108, %109, %110, %111, %112, %113 in 2 : vector<2x8x1xf32>, vector<2x8x1xf32>, vector<2x8x1xf32>, vector<2x8x1xf32>, vector<2x8x1xf32>, vector<2x8x1xf32>, vector<2x8x1xf32>, vector<2x8x1xf32>, vector<2x8x1xf32>, vector<2x8x1xf32>, vector<2x8x1xf32>, vector<2x8x1xf32>, vector<2x8x1xf32>, vector<2x8x1xf32>, vector<2x8x1xf32>, vector<2x8x1xf32> -> vector<2x8x16xf32>
    %115 = vector.extract_strided_slice %114 {offsets = [0, 0, 0], sizes = [2, 7, 16], strides = [1, 1, 1]} : vector<2x8x16xf32> to vector<2x7x16xf32>
    %116 = vector.extract_strided_slice %114 {offsets = [0, 1, 0], sizes = [2, 7, 16], strides = [1, 1, 1]} : vector<2x8x16xf32> to vector<2x7x16xf32>
    %117 = arith.maximumf %115, %116 : vector<2x7x16xf32>
    %118 = vector.extract_strided_slice %117 {offsets = [0, 0, 0], sizes = [2, 5, 16], strides = [1, 1, 1]} : vector<2x7x16xf32> to vector<2x5x16xf32>
    %119 = vector.extract_strided_slice %117 {offsets = [0, 2, 0], sizes = [2, 5, 16], strides = [1, 1, 1]} : vector<2x7x16xf32> to vector<2x5x16xf32>
    %120 = arith.maximumf %118, %119 : vector<2x5x16xf32>
    %121 = vector.extract_strided_slice %120 {offsets = [0, 0, 0], sizes = [2, 1, 16], strides = [1, 1, 1]} : vector<2x5x16xf32> to vector<2x1x16xf32>
    %122 = vector.shape_cast %121 : vector<2x1x16xf32> to vector<2x16xf32>
    %123 = vector.extract_strided_slice %120 {offsets = [0, 4, 0], sizes = [2, 1, 16], strides = [1, 1, 1]} : vector<2x5x16xf32> to vector<2x1x16xf32>
    %124 = vector.shape_cast %123 : vector<2x1x16xf32> to vector<2x16xf32>
    %125 = tpu.concatenate %122, %124 in 1 : vector<2x16xf32>, vector<2x16xf32> -> vector<2x32xf32>
    %cst_7 = arith.constant dense<0.000000e+00> : vector<2x10xf32>
    %126 = tpu.matmul %125, %64, %cst_7 {dimension_numbers = #tpu.dot_dimension_numbers<[1], [0], [0], [1], [0, 0, 1, 1], [], []>} : vector<2x32xf32>, vector<32x10xf32>, vector<2x10xf32> -> vector<2x10xf32>
    %127 = vector.broadcast %66 : vector<1x10xf32> to vector<2x10xf32>
    %128 = arith.addf %126, %127 : vector<2x10xf32>
    %c0_8 = arith.constant 0 : index
    %c0_9 = arith.constant 0 : index
    %c0_10 = arith.constant 0 : index
    %129 = vector.load %arg4[%c0_8, %c0_9, %c0_10] : memref<1x2x10xf32, #tpu.memory_space<vmem>>, vector<1x2x10xf32>
    %130 = vector.shape_cast %129 : vector<1x2x10xf32> to vector<2x10xf32>
    %131 = vector.shape_cast %128 : vector<2x10xf32> to vector<1x2x10xf32>
    tpu.vector_store %arg4[%c0_8, %c0_9, %c0_10], %131 {strides = array<i32>} : memref<1x2x10xf32, #tpu.memory_space<vmem>>, vector<1x2x10xf32>,
    return
  }
  func.func @transform_0(%arg0: i32) -> (i32, i32, i32, i32) {
    %c0_i32 = arith.constant 0 : i32
    %c0_i32_0 = arith.constant 0 : i32
    %c0_i32_1 = arith.constant 0 : i32
    %c0_i32_2 = arith.constant 0 : i32
    return %arg0, %c0_i32, %c0_i32_0, %c0_i32_1 : i32, i32, i32, i32
  }
  func.func @transform_1(%arg0: i32) -> i32 {
    %c0_i32 = arith.constant 0 : i32
    %c0_i32_0 = arith.constant 0 : i32
    return %c0_i32 : i32
  }
  func.func @transform_2(%arg0: i32) -> (i32, i32) {
    %c0_i32 = arith.constant 0 : i32
    %c0_i32_0 = arith.constant 0 : i32
    %c0_i32_1 = arith.constant 0 : i32
    return %c0_i32, %c0_i32_0 : i32, i32
  }
  func.func @transform_3(%arg0: i32) -> (i32, i32, i32) {
    %c0_i32 = arith.constant 0 : i32
    %c0_i32_0 = arith.constant 0 : i32
    %c0_i32_1 = arith.constant 0 : i32
    return %arg0, %c0_i32, %c0_i32_0 : i32, i32, i32
  }
}

</mosaic_0001>

<llo_original>
// kernel: tpu_custom_call.1
$region0: #{tpu_custom_call.1}
  #allocation0 [shape = 'u32[]', space=smem, size = 0x4, offset = 0x4, fixed_abs, tag = 'smem constant byte address 0x4 - core index']
  #allocation1 [shape = 'u32[144,128]{1,0:T(1,128)}', space=vmem, size = 0x12000, scoped, tag = 'internal scratch']
  %s0 = inlined_call_operand.vmem [shape: f32[1,2,37,37], index: 0, kind: input, shape index: {}]
  %s1 = inlined_call_operand.vmem [shape: f32[5], index: 1, kind: input, shape index: {}]
  %s2 = inlined_call_operand.vmem [shape: f32[38,72], index: 2, kind: input, shape index: {}]
  %s3 = inlined_call_operand.hbm [shape: f32[1,2,10], index: 3, kind: output, shape index: {}]
  %s4 = sld [smem:[#allocation0]]
  $region26: #{tpu_custom_call.1} parent=0
    _
  %s6 = ssub.s32 1, %s4
  %s7 = scalar_select 0, %s6, %s4
  $region1: #{tpu_custom_call.1} parent=0
    #allocation2 [shape = 'u8[512]{0}', space=smem, size = 0x200, scoped, tag = 'input window, operand 1, single buffered']
    #allocation3 [shape = 's32[1]{0}', space=sflag, size = 0x4, scoped, tag = 'scoped memory for tpu_custom_call.1']
    #allocation4 [shape = 's32[1]{0}', space=sflag, size = 0x4, scoped, tag = 'scoped memory for tpu_custom_call.1']
    #allocation5 [shape = 'u8[1024]{0}', space=vmem, size = 0x400, scoped, tag = 'output window, operand 0, single buffered']
    %8 = vsyncpa [#allocation4], 0
    %9 = vsyncpa [#allocation3], 0
    // Predicated region
    $region2: #{tpu_custom_call.1} parent=1 // pred_check
      _
    $region3: #{tpu_custom_call.1} parent=1 // pred_check_branch
      %11 = sbr.rel (0) target = $region5
    $region4: #{tpu_custom_call.1} parent=1 // pred_region
      _
    $region5: #{tpu_custom_call.1} parent=1 // pred_fallthru
      _
    // Predicated region
    $region6: #{tpu_custom_call.1} parent=1 // pred_check
      _
    $region7: #{tpu_custom_call.1} parent=1 // pred_check_branch
      %13 = sbr.rel (0) target = $region9
    $region8: #{tpu_custom_call.1} parent=1 // pred_region
      %s15 = ssub.s32 16, 16
      %16 = vsyncadd [#allocation4], %s15
      %s18 = sshll.u32 %s1, 4
      %s19 = int_to_ptr.vmem [resolvable:$true] %s18
      %21 = dma.vmem_to_smem %s19, 16, [#allocation2], [#allocation4]
    $region9: #{tpu_custom_call.1} parent=1 // pred_fallthru
      _
    // Predicated region
    $region10: #{tpu_custom_call.1} parent=1 // pred_check
      _
    $region11: #{tpu_custom_call.1} parent=1 // pred_check_branch
      %23 = sbr.rel (0) target = $region13
    $region12: #{tpu_custom_call.1} parent=1 // pred_region
      _
    $region13: #{tpu_custom_call.1} parent=1 // pred_fallthru
      _
    // Predicated region
    $region14: #{tpu_custom_call.1} parent=1 // pred_check
      _
    $region15: #{tpu_custom_call.1} parent=1 // pred_check_branch
      %25 = sbr.rel (0) target = $region17
    $region16: #{tpu_custom_call.1} parent=1 // pred_region
      %26 = dma.done [#allocation4], 16
    $region17: #{tpu_custom_call.1} parent=1 // pred_fallthru
      _
    %27 = sfence
    %v28 = vld [vmem:[%s0] sm:$0xff]
    %v29 = vld [vmem:[%s0 + $0x8] sm:$0xff]
    %v30 = vld [vmem:[%s0 + $0x10] sm:$0xff]
    %v31 = vld [vmem:[%s0 + $0x18] sm:$0xff]
    %v32 = vld [vmem:[%s0 + $0x20] sm:$0x1f]
    %v33 = vld [vmem:[%s0 + $0x28] sm:$0xff]
    %v34 = vld [vmem:[%s0 + $0x30] sm:$0xff]
    %v35 = vld [vmem:[%s0 + $0x38] sm:$0xff]
    %v36 = vld [vmem:[%s0 + $0x40] sm:$0xff]
    %v37 = vld [vmem:[%s0 + $0x48] sm:$0x1f]
    %s38 = sld [smem:[#allocation2]]
    %v39 = vstv %s38
    %v40 = vmul.f32 %v39, %v28
    %v41 = vmul.f32 %v39, %v29
    %v42 = vmul.f32 %v39, %v30
    %v43 = vmul.f32 %v39, %v31
    %v44 = vmul.f32 %v39, %v32
    %v45 = vmul.f32 %v39, %v33
    %v46 = vmul.f32 %v39, %v34
    %v47 = vmul.f32 %v39, %v35
    %v48 = vmul.f32 %v39, %v36
    %v49 = vmul.f32 %v39, %v37
    %s50 = sld [smem:[#allocation2 + $0x1]]
    %v51 = vstv %s50
    %v52 = vmul.f32 %v51, %v28
    %v53 = vmul.f32 %v51, %v29
    %v54 = vmul.f32 %v51, %v30
    %v55 = vmul.f32 %v51, %v31
    %v56 = vmul.f32 %v51, %v32
    %v57 = vmul.f32 %v51, %v33
    %v58 = vmul.f32 %v51, %v34
    %v59 = vmul.f32 %v51, %v35
    %v60 = vmul.f32 %v51, %v36
    %v61 = vmul.f32 %v51, %v37
    %72 = vrot.lane.b32.xlu0 %v52, 127
    %v73 = vpop.permute.xlu0 %72
    %74 = vrot.lane.b32.xlu0 %v53, 127
    %v75 = vpop.permute.xlu0 %74
    %76 = vrot.lane.b32.xlu0 %v54, 127
    %v77 = vpop.permute.xlu0 %76
    %78 = vrot.lane.b32.xlu0 %v55, 127
    %v79 = vpop.permute.xlu0 %78
    %80 = vrot.lane.b32.xlu0 %v56, 127
    %v81 = vpop.permute.xlu0 %80
    %82 = vrot.lane.b32.xlu0 %v57, 127
    %v83 = vpop.permute.xlu0 %82
    %84 = vrot.lane.b32.xlu0 %v58, 127
    %v85 = vpop.permute.xlu0 %84
    %86 = vrot.lane.b32.xlu0 %v59, 127
    %v87 = vpop.permute.xlu0 %86
    %88 = vrot.lane.b32.xlu0 %v60, 127
    %v89 = vpop.permute.xlu0 %88
    %90 = vrot.lane.b32.xlu0 %v61, 127
    %v91 = vpop.permute.xlu0 %90
    %v102 = vadd.f32 %v40, %v73
    %v103 = vadd.f32 %v41, %v75
    %v104 = vadd.f32 %v42, %v77
    %v105 = vadd.f32 %v43, %v79
    %v106 = vadd.f32 %v44, %v81
    %v107 = vadd.f32 %v45, %v83
    %v108 = vadd.f32 %v46, %v85
    %v109 = vadd.f32 %v47, %v87
    %v110 = vadd.f32 %v48, %v89
    %v111 = vadd.f32 %v49, %v91
    %s112 = sld [smem:[#allocation2 + $0x2]]
    %v113 = vstv %s112
    %v114 = vmul.f32 %v113, %v28
    %v115 = vmul.f32 %v113, %v29
    %v116 = vmul.f32 %v113, %v30
    %v117 = vmul.f32 %v113, %v31
    %v118 = vmul.f32 %v113, %v32
    %v119 = vmul.f32 %v113, %v33
    %v120 = vmul.f32 %v113, %v34
    %v121 = vmul.f32 %v113, %v35
    %v122 = vmul.f32 %v113, %v36
    %v123 = vmul.f32 %v113, %v37
    %vm134 = vcmask 1046528
    %v135 = vrot.slane %v114, 1
    %v136 = vrot.slane %v115, 1
    %v137 = vsel %vm134, %v135, %v136
    %v138 = vrot.slane %v116, 1
    %v139 = vsel %vm134, %v136, %v138
    %v140 = vrot.slane %v117, 1
    %v141 = vsel %vm134, %v138, %v140
    %v142 = vrot.slane %v118, 1
    %v143 = vsel %vm134, %v140, %v142
    %v144 = vrot.slane %v119, 1
    %v145 = vrot.slane %v120, 1
    %v146 = vsel %vm134, %v144, %v145
    %v147 = vrot.slane %v121, 1
    %v148 = vsel %vm134, %v145, %v147
    %v149 = vrot.slane %v122, 1
    %v150 = vsel %vm134, %v147, %v149
    %v151 = vrot.slane %v123, 1
    %v152 = vsel %vm134, %v149, %v151
    %v163 = vadd.f32 %v102, %v137
    %v164 = vadd.f32 %v103, %v139
    %v165 = vadd.f32 %v104, %v141
    %v166 = vadd.f32 %v105, %v143
    %v167 = vadd.f32 %v106, %v142
    %v168 = vadd.f32 %v107, %v146
    %v169 = vadd.f32 %v108, %v148
    %v170 = vadd.f32 %v109, %v150
    %v171 = vadd.f32 %v110, %v152
    %v172 = vadd.f32 %v111, %v151
    %s173 = sld [smem:[#allocation2 + $0x3]]
    %v174 = vstv %s173
    %v175 = vmul.f32 %v174, %v28
    %v176 = vmul.f32 %v174, %v29
    %v177 = vmul.f32 %v174, %v30
    %v178 = vmul.f32 %v174, %v31
    %v179 = vmul.f32 %v174, %v32
    %v180 = vmul.f32 %v174, %v33
    %v181 = vmul.f32 %v174, %v34
    %v182 = vmul.f32 %v174, %v35
    %v183 = vmul.f32 %v174, %v36
    %v184 = vmul.f32 %v174, %v37
    %v195 = vrot.slane %v175, 1
    %v196 = vrot.slane %v176, 1
    %v197 = vsel %vm134, %v195, %v196
    %v198 = vrot.slane %v177, 1
    %v199 = vsel %vm134, %v196, %v198
    %v200 = vrot.slane %v178, 1
    %v201 = vsel %vm134, %v198, %v200
    %v202 = vrot.slane %v179, 1
    %v203 = vsel %vm134, %v200, %v202
    %v204 = vrot.slane %v180, 1
    %v205 = vrot.slane %v181, 1
    %v206 = vsel %vm134, %v204, %v205
    %v207 = vrot.slane %v182, 1
    %v208 = vsel %vm134, %v205, %v207
    %v209 = vrot.slane %v183, 1
    %v210 = vsel %vm134, %v207, %v209
    %v211 = vrot.slane %v184, 1
    %v212 = vsel %vm134, %v209, %v211
    %213 = vrot.lane.b32.xlu0 %v197, 127
    %v214 = vpop.permute.xlu0 %213
    %215 = vrot.lane.b32.xlu0 %v199, 127
    %v216 = vpop.permute.xlu0 %215
    %217 = vrot.lane.b32.xlu0 %v201, 127
    %v218 = vpop.permute.xlu0 %217
    %219 = vrot.lane.b32.xlu0 %v203, 127
    %v220 = vpop.permute.xlu0 %219
    %221 = vrot.lane.b32.xlu0 %v202, 127
    %v222 = vpop.permute.xlu0 %221
    %223 = vrot.lane.b32.xlu0 %v206, 127
    %v224 = vpop.permute.xlu0 %223
    %225 = vrot.lane.b32.xlu0 %v208, 127
    %v226 = vpop.permute.xlu0 %225
    %227 = vrot.lane.b32.xlu0 %v210, 127
    %v228 = vpop.permute.xlu0 %227
    %229 = vrot.lane.b32.xlu0 %v212, 127
    %v230 = vpop.permute.xlu0 %229
    %231 = vrot.lane.b32.xlu0 %v211, 127
    %v232 = vpop.permute.xlu0 %231
    %v243 = vadd.f32 %v163, %v214
    %v244 = vadd.f32 %v164, %v216
    %v245 = vadd.f32 %v165, %v218
    %v246 = vadd.f32 %v166, %v220
    %v247 = vadd.f32 %v167, %v222
    %v248 = vadd.f32 %v168, %v224
    %v249 = vadd.f32 %v169, %v226
    %v250 = vadd.f32 %v170, %v228
    %v251 = vadd.f32 %v171, %v230
    %v252 = vadd.f32 %v172, %v232
    %s253 = sld [smem:[#allocation2 + $0x4]]
    %v254 = vstv %s253
    %v255 = vadd.f32 %v243, %v254
    %v256 = vadd.f32 %v244, %v254
    %v257 = vadd.f32 %v245, %v254
    %v258 = vadd.f32 %v246, %v254
    %v259 = vadd.f32 %v247, %v254
    %v260 = vadd.f32 %v248, %v254
    %v261 = vadd.f32 %v249, %v254
    %v262 = vadd.f32 %v250, %v254
    %v263 = vadd.f32 %v251, %v254
    %v264 = vadd.f32 %v252, %v254
    %v265 = vmax.f32 %v255, 0.0
    %v266 = vmax.f32 %v256, 0.0
    %v267 = vmax.f32 %v257, 0.0
    %v268 = vmax.f32 %v258, 0.0
    %v269 = vmax.f32 %v259, 0.0
    %v270 = vmax.f32 %v260, 0.0
    %v271 = vmax.f32 %v261, 0.0
    %v272 = vmax.f32 %v262, 0.0
    %v273 = vmax.f32 %v263, 0.0
    %v274 = vmax.f32 %v264, 0.0
    %285 = vrot.lane.b32.xlu0 %v265, 127
    %v286 = vpop.permute.xlu0 %285
    %287 = vrot.lane.b32.xlu0 %v266, 127
    %v288 = vpop.permute.xlu0 %287
    %289 = vrot.lane.b32.xlu0 %v267, 127
    %v290 = vpop.permute.xlu0 %289
    %291 = vrot.lane.b32.xlu0 %v268, 127
    %v292 = vpop.permute.xlu0 %291
    %293 = vrot.lane.b32.xlu0 %v269, 127
    %v294 = vpop.permute.xlu0 %293
    %295 = vrot.lane.b32.xlu0 %v270, 127
    %v296 = vpop.permute.xlu0 %295
    %297 = vrot.lane.b32.xlu0 %v271, 127
    %v298 = vpop.permute.xlu0 %297
    %299 = vrot.lane.b32.xlu0 %v272, 127
    %v300 = vpop.permute.xlu0 %299
    %301 = vrot.lane.b32.xlu0 %v273, 127
    %v302 = vpop.permute.xlu0 %301
    %303 = vrot.lane.b32.xlu0 %v274, 127
    %v304 = vpop.permute.xlu0 %303
    %v315 = vmax.f32 %v265, %v286
    %v316 = vmax.f32 %v266, %v288
    %v317 = vmax.f32 %v267, %v290
    %v318 = vmax.f32 %v268, %v292
    %v319 = vmax.f32 %v269, %v294
    %v320 = vmax.f32 %v270, %v296
    %v321 = vmax.f32 %v271, %v298
    %v322 = vmax.f32 %v272, %v300
    %v323 = vmax.f32 %v273, %v302
    %v324 = vmax.f32 %v274, %v304
    %335 = vrot.lane.b32.xlu0 %v315, 126
    %v336 = vpop.permute.xlu0 %335
    %337 = vrot.lane.b32.xlu0 %v316, 126
    %v338 = vpop.permute.xlu0 %337
    %339 = vrot.lane.b32.xlu0 %v317, 126
    %v340 = vpop.permute.xlu0 %339
    %341 = vrot.lane.b32.xlu0 %v318, 126
    %v342 = vpop.permute.xlu0 %341
    %343 = vrot.lane.b32.xlu0 %v319, 126
    %v344 = vpop.permute.xlu0 %343
    %345 = vrot.lane.b32.xlu0 %v320, 126
    %v346 = vpop.permute.xlu0 %345
    %347 = vrot.lane.b32.xlu0 %v321, 126
    %v348 = vpop.permute.xlu0 %347
    %349 = vrot.lane.b32.xlu0 %v322, 126
    %v350 = vpop.permute.xlu0 %349
    %351 = vrot.lane.b32.xlu0 %v323, 126
    %v352 = vpop.permute.xlu0 %351
    %353 = vrot.lane.b32.xlu0 %v324, 126
    %v354 = vpop.permute.xlu0 %353
    %v365 = vmax.f32 %v315, %v336
    %v366 = vmax.f32 %v316, %v338
    %v367 = vmax.f32 %v317, %v340
    %v368 = vmax.f32 %v318, %v342
    %v369 = vmax.f32 %v319, %v344
    %v370 = vmax.f32 %v320, %v346
    %v371 = vmax.f32 %v321, %v348
    %v372 = vmax.f32 %v322, %v350
    %v373 = vmax.f32 %v323, %v352
    %v374 = vmax.f32 %v324, %v354
    %385 = vrot.lane.b32.xlu0 %v365, 125
    %v386 = vpop.permute.xlu0 %385
    %387 = vrot.lane.b32.xlu0 %v366, 125
    %v388 = vpop.permute.xlu0 %387
    %389 = vrot.lane.b32.xlu0 %v367, 125
    %v390 = vpop.permute.xlu0 %389
    %391 = vrot.lane.b32.xlu0 %v368, 125
    %v392 = vpop.permute.xlu0 %391
    %393 = vrot.lane.b32.xlu0 %v369, 125
    %v394 = vpop.permute.xlu0 %393
    %395 = vrot.lane.b32.xlu0 %v370, 125
    %v396 = vpop.permute.xlu0 %395
    %397 = vrot.lane.b32.xlu0 %v371, 125
    %v398 = vpop.permute.xlu0 %397
    %399 = vrot.lane.b32.xlu0 %v372, 125
    %v400 = vpop.permute.xlu0 %399
    %401 = vrot.lane.b32.xlu0 %v373, 125
    %v402 = vpop.permute.xlu0 %401
    %403 = vrot.lane.b32.xlu0 %v374, 125
    %v404 = vpop.permute.xlu0 %403
    %415 = vrot.lane.b32.xlu0 %v365, 122
    %v416 = vpop.permute.xlu0 %415
    %417 = vrot.lane.b32.xlu0 %v366, 122
    %v418 = vpop.permute.xlu0 %417
    %419 = vrot.lane.b32.xlu0 %v367, 122
    %v420 = vpop.permute.xlu0 %419
    %421 = vrot.lane.b32.xlu0 %v368, 122
    %v422 = vpop.permute.xlu0 %421
    %423 = vrot.lane.b32.xlu0 %v369, 122
    %v424 = vpop.permute.xlu0 %423
    %425 = vrot.lane.b32.xlu0 %v370, 122
    %v426 = vpop.permute.xlu0 %425
    %427 = vrot.lane.b32.xlu0 %v371, 122
    %v428 = vpop.permute.xlu0 %427
    %429 = vrot.lane.b32.xlu0 %v372, 122
    %v430 = vpop.permute.xlu0 %429
    %431 = vrot.lane.b32.xlu0 %v373, 122
    %v432 = vpop.permute.xlu0 %431
    %433 = vrot.lane.b32.xlu0 %v374, 122
    %v434 = vpop.permute.xlu0 %433
    %445 = vrot.lane.b32.xlu0 %v365, 119
    %v446 = vpop.permute.xlu0 %445
    %447 = vrot.lane.b32.xlu0 %v366, 119
    %v448 = vpop.permute.xlu0 %447
    %449 = vrot.lane.b32.xlu0 %v367, 119
    %v450 = vpop.permute.xlu0 %449
    %451 = vrot.lane.b32.xlu0 %v368, 119
    %v452 = vpop.permute.xlu0 %451
    %453 = vrot.lane.b32.xlu0 %v369, 119
    %v454 = vpop.permute.xlu0 %453
    %455 = vrot.lane.b32.xlu0 %v370, 119
    %v456 = vpop.permute.xlu0 %455
    %457 = vrot.lane.b32.xlu0 %v371, 119
    %v458 = vpop.permute.xlu0 %457
    %459 = vrot.lane.b32.xlu0 %v372, 119
    %v460 = vpop.permute.xlu0 %459
    %461 = vrot.lane.b32.xlu0 %v373, 119
    %v462 = vpop.permute.xlu0 %461
    %463 = vrot.lane.b32.xlu0 %v374, 119
    %v464 = vpop.permute.xlu0 %463
    %475 = vrot.lane.b32.xlu0 %v365, 116
    %v476 = vpop.permute.xlu0 %475
    %477 = vrot.lane.b32.xlu0 %v366, 116
    %v478 = vpop.permute.xlu0 %477
    %479 = vrot.lane.b32.xlu0 %v367, 116
    %v480 = vpop.permute.xlu0 %479
    %481 = vrot.lane.b32.xlu0 %v368, 116
    %v482 = vpop.permute.xlu0 %481
    %483 = vrot.lane.b32.xlu0 %v369, 116
    %v484 = vpop.permute.xlu0 %483
    %485 = vrot.lane.b32.xlu0 %v370, 116
    %v486 = vpop.permute.xlu0 %485
    %487 = vrot.lane.b32.xlu0 %v371, 116
    %v488 = vpop.permute.xlu0 %487
    %489 = vrot.lane.b32.xlu0 %v372, 116
    %v490 = vpop.permute.xlu0 %489
    %491 = vrot.lane.b32.xlu0 %v373, 116
    %v492 = vpop.permute.xlu0 %491
    %493 = vrot.lane.b32.xlu0 %v374, 116
    %v494 = vpop.permute.xlu0 %493
    %505 = vrot.lane.b32.xlu0 %v365, 113
    %v506 = vpop.permute.xlu0 %505
    %507 = vrot.lane.b32.xlu0 %v366, 113
    %v508 = vpop.permute.xlu0 %507
    %509 = vrot.lane.b32.xlu0 %v367, 113
    %v510 = vpop.permute.xlu0 %509
    %511 = vrot.lane.b32.xlu0 %v368, 113
    %v512 = vpop.permute.xlu0 %511
    %513 = vrot.lane.b32.xlu0 %v369, 113
    %v514 = vpop.permute.xlu0 %513
    %515 = vrot.lane.b32.xlu0 %v370, 113
    %v516 = vpop.permute.xlu0 %515
    %517 = vrot.lane.b32.xlu0 %v371, 113
    %v518 = vpop.permute.xlu0 %517
    %519 = vrot.lane.b32.xlu0 %v372, 113
    %v520 = vpop.permute.xlu0 %519
    %521 = vrot.lane.b32.xlu0 %v373, 113
    %v522 = vpop.permute.xlu0 %521
    %523 = vrot.lane.b32.xlu0 %v374, 113
    %v524 = vpop.permute.xlu0 %523
    %535 = vrot.lane.b32.xlu0 %v365, 110
    %v536 = vpop.permute.xlu0 %535
    %537 = vrot.lane.b32.xlu0 %v366, 110
    %v538 = vpop.permute.xlu0 %537
    %539 = vrot.lane.b32.xlu0 %v367, 110
    %v540 = vpop.permute.xlu0 %539
    %541 = vrot.lane.b32.xlu0 %v368, 110
    %v542 = vpop.permute.xlu0 %541
    %543 = vrot.lane.b32.xlu0 %v369, 110
    %v544 = vpop.permute.xlu0 %543
    %545 = vrot.lane.b32.xlu0 %v370, 110
    %v546 = vpop.permute.xlu0 %545
    %547 = vrot.lane.b32.xlu0 %v371, 110
    %v548 = vpop.permute.xlu0 %547
    %549 = vrot.lane.b32.xlu0 %v372, 110
    %v550 = vpop.permute.xlu0 %549
    %551 = vrot.lane.b32.xlu0 %v373, 110
    %v552 = vpop.permute.xlu0 %551
    %553 = vrot.lane.b32.xlu0 %v374, 110
    %v554 = vpop.permute.xlu0 %553
    %565 = vrot.lane.b32.xlu0 %v365, 107
    %v566 = vpop.permute.xlu0 %565
    %567 = vrot.lane.b32.xlu0 %v366, 107
    %v568 = vpop.permute.xlu0 %567
    %569 = vrot.lane.b32.xlu0 %v367, 107
    %v570 = vpop.permute.xlu0 %569
    %571 = vrot.lane.b32.xlu0 %v368, 107
    %v572 = vpop.permute.xlu0 %571
    %573 = vrot.lane.b32.xlu0 %v369, 107
    %v574 = vpop.permute.xlu0 %573
    %575 = vrot.lane.b32.xlu0 %v370, 107
    %v576 = vpop.permute.xlu0 %575
    %577 = vrot.lane.b32.xlu0 %v371, 107
    %v578 = vpop.permute.xlu0 %577
    %579 = vrot.lane.b32.xlu0 %v372, 107
    %v580 = vpop.permute.xlu0 %579
    %581 = vrot.lane.b32.xlu0 %v373, 107
    %v582 = vpop.permute.xlu0 %581
    %583 = vrot.lane.b32.xlu0 %v374, 107
    %v584 = vpop.permute.xlu0 %583
    %595 = vrot.lane.b32.xlu0 %v365, 104
    %v596 = vpop.permute.xlu0 %595
    %597 = vrot.lane.b32.xlu0 %v366, 104
    %v598 = vpop.permute.xlu0 %597
    %599 = vrot.lane.b32.xlu0 %v367, 104
    %v600 = vpop.permute.xlu0 %599
    %601 = vrot.lane.b32.xlu0 %v368, 104
    %v602 = vpop.permute.xlu0 %601
    %603 = vrot.lane.b32.xlu0 %v369, 104
    %v604 = vpop.permute.xlu0 %603
    %605 = vrot.lane.b32.xlu0 %v370, 104
    %v606 = vpop.permute.xlu0 %605
    %607 = vrot.lane.b32.xlu0 %v371, 104
    %v608 = vpop.permute.xlu0 %607
    %609 = vrot.lane.b32.xlu0 %v372, 104
    %v610 = vpop.permute.xlu0 %609
    %611 = vrot.lane.b32.xlu0 %v373, 104
    %v612 = vpop.permute.xlu0 %611
    %613 = vrot.lane.b32.xlu0 %v374, 104
    %v614 = vpop.permute.xlu0 %613
    %vm625 = vcmask 7168
    %v626 = vsel %vm625, %v365, %v386
    %v627 = vsel %vm625, %v366, %v388
    %v628 = vsel %vm625, %v367, %v390
    %v629 = vsel %vm625, %v368, %v392
    %v630 = vsel %vm625, %v369, %v394
    %v631 = vsel %vm625, %v370, %v396
    %v632 = vsel %vm625, %v371, %v398
    %v633 = vsel %vm625, %v372, %v400
    %v634 = vsel %vm625, %v373, %v402
    %v635 = vsel %vm625, %v374, %v404
    %vm636 = vcmask 15360
    %v637 = vsel %vm636, %v626, %v416
    %v638 = vsel %vm636, %v627, %v418
    %v639 = vsel %vm636, %v628, %v420
    %v640 = vsel %vm636, %v629, %v422
    %v641 = vsel %vm636, %v630, %v424
    %v642 = vsel %vm636, %v631, %v426
    %v643 = vsel %vm636, %v632, %v428
    %v644 = vsel %vm636, %v633, %v430
    %v645 = vsel %vm636, %v634, %v432
    %v646 = vsel %vm636, %v635, %v434
    %vm647 = vcmask 23552
    %v648 = vsel %vm647, %v637, %v446
    %v649 = vsel %vm647, %v638, %v448
    %v650 = vsel %vm647, %v639, %v450
    %v651 = vsel %vm647, %v640, %v452
    %v652 = vsel %vm647, %v641, %v454
    %v653 = vsel %vm647, %v642, %v456
    %v654 = vsel %vm647, %v643, %v458
    %v655 = vsel %vm647, %v644, %v460
    %v656 = vsel %vm647, %v645, %v462
    %v657 = vsel %vm647, %v646, %v464
    %vm658 = vcmask 31744
    %v659 = vsel %vm658, %v648, %v476
    %v660 = vsel %vm658, %v649, %v478
    %v661 = vsel %vm658, %v650, %v480
    %v662 = vsel %vm658, %v651, %v482
    %v663 = vsel %vm658, %v652, %v484
    %v664 = vsel %vm658, %v653, %v486
    %v665 = vsel %vm658, %v654, %v488
    %v666 = vsel %vm658, %v655, %v490
    %v667 = vsel %vm658, %v656, %v492
    %v668 = vsel %vm658, %v657, %v494
    %vm669 = vcmask 39936
    %v670 = vsel %vm669, %v659, %v506
    %v671 = vsel %vm669, %v660, %v508
    %v672 = vsel %vm669, %v661, %v510
    %v673 = vsel %vm669, %v662, %v512
    %v674 = vsel %vm669, %v663, %v514
    %v675 = vsel %vm669, %v664, %v516
    %v676 = vsel %vm669, %v665, %v518
    %v677 = vsel %vm669, %v666, %v520
    %v678 = vsel %vm669, %v667, %v522
    %v679 = vsel %vm669, %v668, %v524
    %vm680 = vcmask 48128
    %v681 = vsel %vm680, %v670, %v536
    %v682 = vsel %vm680, %v671, %v538
    %v683 = vsel %vm680, %v672, %v540
    %v684 = vsel %vm680, %v673, %v542
    %v685 = vsel %vm680, %v674, %v544
    %v686 = vsel %vm680, %v675, %v546
    %v687 = vsel %vm680, %v676, %v548
    %v688 = vsel %vm680, %v677, %v550
    %v689 = vsel %vm680, %v678, %v552
    %v690 = vsel %vm680, %v679, %v554
    %vm691 = vcmask 56320
    %v692 = vsel %vm691, %v681, %v566
    %v693 = vsel %vm691, %v682, %v568
    %v694 = vsel %vm691, %v683, %v570
    %v695 = vsel %vm691, %v684, %v572
    %v696 = vsel %vm691, %v685, %v574
    %v697 = vsel %vm691, %v686, %v576
    %v698 = vsel %vm691, %v687, %v578
    %v699 = vsel %vm691, %v688, %v580
    %v700 = vsel %vm691, %v689, %v582
    %v701 = vsel %vm691, %v690, %v584
    %vm702 = vcmask 64512
    %v703 = vsel %vm702, %v692, %v596
    %v704 = vsel %vm702, %v693, %v598
    %v705 = vsel %vm702, %v694, %v600
    %v706 = vsel %vm702, %v695, %v602
    %v707 = vsel %vm702, %v696, %v604
    %v708 = vsel %vm702, %v697, %v606
    %v709 = vsel %vm702, %v698, %v608
    %v710 = vsel %vm702, %v699, %v610
    %v711 = vsel %vm702, %v700, %v612
    %v712 = vsel %vm702, %v701, %v614
    %v723 = vrot.slane %v703, 1
    %v724 = vrot.slane %v704, 1
    %v725 = vsel %vm134, %v723, %v724
    %v726 = vrot.slane %v705, 1
    %v727 = vsel %vm134, %v724, %v726
    %v728 = vrot.slane %v706, 1
    %v729 = vsel %vm134, %v726, %v728
    %v730 = vrot.slane %v707, 1
    %v731 = vsel %vm134, %v728, %v730
    %v732 = vrot.slane %v708, 1
    %v733 = vrot.slane %v709, 1
    %v734 = vsel %vm134, %v732, %v733
    %v735 = vrot.slane %v710, 1
    %v736 = vsel %vm134, %v733, %v735
    %v737 = vrot.slane %v711, 1
    %v738 = vsel %vm134, %v735, %v737
    %v739 = vrot.slane %v712, 1
    %v740 = vsel %vm134, %v737, %v739
    %v751 = vmax.f32 %v703, %v725
    %v752 = vmax.f32 %v704, %v727
    %v753 = vmax.f32 %v705, %v729
    %v754 = vmax.f32 %v706, %v731
    %v755 = vmax.f32 %v707, %v730
    %v756 = vmax.f32 %v708, %v734
    %v757 = vmax.f32 %v709, %v736
    %v758 = vmax.f32 %v710, %v738
    %v759 = vmax.f32 %v711, %v740
    %v760 = vmax.f32 %v712, %v739
    %vm771 = vcmask 1045504
    %v772 = vrot.slane %v751, 2
    %v773 = vrot.slane %v752, 2
    %v774 = vsel %vm771, %v772, %v773
    %v775 = vrot.slane %v753, 2
    %v776 = vsel %vm771, %v773, %v775
    %v777 = vrot.slane %v754, 2
    %v778 = vsel %vm771, %v775, %v777
    %v779 = vrot.slane %v755, 2
    %v780 = vsel %vm771, %v777, %v779
    %v781 = vrot.slane %v756, 2
    %v782 = vrot.slane %v757, 2
    %v783 = vsel %vm771, %v781, %v782
    %v784 = vrot.slane %v758, 2
    %v785 = vsel %vm771, %v782, %v784
    %v786 = vrot.slane %v759, 2
    %v787 = vsel %vm771, %v784, %v786
    %v788 = vrot.slane %v760, 2
    %v789 = vsel %vm771, %v786, %v788
    %v800 = vmax.f32 %v751, %v774
    %v801 = vmax.f32 %v752, %v776
    %v802 = vmax.f32 %v753, %v778
    %v803 = vmax.f32 %v754, %v780
    %v804 = vmax.f32 %v755, %v779
    %v805 = vmax.f32 %v756, %v783
    %v806 = vmax.f32 %v757, %v785
    %v807 = vmax.f32 %v758, %v787
    %v808 = vmax.f32 %v759, %v789
    %v809 = vmax.f32 %v760, %v788
    %v812 = vrot.slane %v800, 3
    %v813 = vrot.slane %v805, 3
    %v818 = vrot.slane %v801, 6
    %v819 = vrot.slane %v806, 6
    %v822 = vrot.slane %v801, 1
    %v823 = vrot.slane %v806, 1
    %v828 = vrot.slane %v802, 4
    %v829 = vrot.slane %v807, 4
    %v832 = vrot.slane %v802, 7
    %v833 = vrot.slane %v807, 7
    %v838 = vrot.slane %v803, 2
    %v839 = vrot.slane %v808, 2
    %v842 = vrot.slane %v803, 5
    %v843 = vrot.slane %v808, 5
    %vm846 = vcmask 1040384
    %v847 = vsel %vm846, %v800, %v812
    %v848 = vsel %vm846, %v805, %v813
    %vm849 = vcmask 1041408
    %v850 = vsel %vm849, %v847, %v818
    %v851 = vsel %vm849, %v848, %v819
    %vm852 = vcmask 1042432
    %v853 = vsel %vm852, %v850, %v822
    %v854 = vsel %vm852, %v851, %v823
    %vm855 = vcmask 1043456
    %v856 = vsel %vm855, %v853, %v828
    %v857 = vsel %vm855, %v854, %v829
    %vm858 = vcmask 1044480
    %v859 = vsel %vm858, %v856, %v832
    %v860 = vsel %vm858, %v857, %v833
    %v861 = vsel %vm771, %v859, %v838
    %v862 = vsel %vm771, %v860, %v839
    %v863 = vsel %vm134, %v861, %v842
    %v864 = vsel %vm134, %v862, %v843
    %869 = vrot.lane.b32.xlu0 %v863, 9
    %v870 = vpop.permute.xlu0 %869
    %871 = vrot.lane.b32.xlu0 %v804, 9
    %v872 = vpop.permute.xlu0 %871
    %873 = vrot.lane.b32.xlu0 %v864, 9
    %v874 = vpop.permute.xlu0 %873
    %875 = vrot.lane.b32.xlu0 %v809, 9
    %v876 = vpop.permute.xlu0 %875
    %881 = vrot.lane.b32.xlu0 %v863, 18
    %v882 = vpop.permute.xlu0 %881
    %883 = vrot.lane.b32.xlu0 %v804, 18
    %v884 = vpop.permute.xlu0 %883
    %885 = vrot.lane.b32.xlu0 %v864, 18
    %v886 = vpop.permute.xlu0 %885
    %887 = vrot.lane.b32.xlu0 %v809, 18
    %v888 = vpop.permute.xlu0 %887
    %893 = vrot.lane.b32.xlu0 %v863, 27
    %v894 = vpop.permute.xlu0 %893
    %895 = vrot.lane.b32.xlu0 %v804, 27
    %v896 = vpop.permute.xlu0 %895
    %897 = vrot.lane.b32.xlu0 %v864, 27
    %v898 = vpop.permute.xlu0 %897
    %899 = vrot.lane.b32.xlu0 %v809, 27
    %v900 = vpop.permute.xlu0 %899
    %905 = vrot.lane.b32.xlu0 %v863, 36
    %v906 = vpop.permute.xlu0 %905
    %907 = vrot.lane.b32.xlu0 %v804, 36
    %v908 = vpop.permute.xlu0 %907
    %909 = vrot.lane.b32.xlu0 %v864, 36
    %v910 = vpop.permute.xlu0 %909
    %911 = vrot.lane.b32.xlu0 %v809, 36
    %v912 = vpop.permute.xlu0 %911
    %917 = vrot.lane.b32.xlu0 %v863, 45
    %v918 = vpop.permute.xlu0 %917
    %919 = vrot.lane.b32.xlu0 %v804, 45
    %v920 = vpop.permute.xlu0 %919
    %921 = vrot.lane.b32.xlu0 %v864, 45
    %v922 = vpop.permute.xlu0 %921
    %923 = vrot.lane.b32.xlu0 %v809, 45
    %v924 = vpop.permute.xlu0 %923
    %929 = vrot.lane.b32.xlu0 %v863, 54
    %v930 = vpop.permute.xlu0 %929
    %931 = vrot.lane.b32.xlu0 %v804, 54
    %v932 = vpop.permute.xlu0 %931
    %933 = vrot.lane.b32.xlu0 %v864, 54
    %v934 = vpop.permute.xlu0 %933
    %935 = vrot.lane.b32.xlu0 %v809, 54
    %v936 = vpop.permute.xlu0 %935
    %941 = vrot.lane.b32.xlu0 %v863, 63
    %v942 = vpop.permute.xlu0 %941
    %943 = vrot.lane.b32.xlu0 %v804, 63
    %v944 = vpop.permute.xlu0 %943
    %945 = vrot.lane.b32.xlu0 %v864, 63
    %v946 = vpop.permute.xlu0 %945
    %947 = vrot.lane.b32.xlu0 %v809, 63
    %v948 = vpop.permute.xlu0 %947
    %vm953 = vcmask 72704
    %v954 = vsel %vm953, %v863, %v870
    %v955 = vsel %vm953, %v804, %v872
    %v956 = vsel %vm953, %v864, %v874
    %v957 = vsel %vm953, %v809, %v876
    %vm958 = vcmask 146432
    %v959 = vsel %vm958, %v954, %v882
    %v960 = vsel %vm958, %v955, %v884
    %v961 = vsel %vm958, %v956, %v886
    %v962 = vsel %vm958, %v957, %v888
    %vm963 = vcmask 220160
    %v964 = vsel %vm963, %v959, %v894
    %v965 = vsel %vm963, %v960, %v896
    %v966 = vsel %vm963, %v961, %v898
    %v967 = vsel %vm963, %v962, %v900
    %vm968 = vcmask 293888
    %v969 = vsel %vm968, %v964, %v906
    %v970 = vsel %vm968, %v965, %v908
    %v971 = vsel %vm968, %v966, %v910
    %v972 = vsel %vm968, %v967, %v912
    %vm973 = vcmask 367616
    %v974 = vsel %vm973, %v969, %v918
    %v975 = vsel %vm973, %v970, %v920
    %v976 = vsel %vm973, %v971, %v922
    %v977 = vsel %vm973, %v972, %v924
    %vm978 = vcmask 441344
    %v979 = vsel %vm978, %v974, %v930
    %v980 = vsel %vm978, %v975, %v932
    %v981 = vsel %vm978, %v976, %v934
    %v982 = vsel %vm978, %v977, %v936
    %vm983 = vcmask 515072
    %v984 = vsel %vm983, %v979, %v942
    %v985 = vsel %vm983, %v980, %v944
    %v986 = vsel %vm983, %v981, %v946
    %v987 = vsel %vm983, %v982, %v948
    %v988 = vld [vmem:[%s2] sm:$0xff]
    %v989 = vld [vmem:[%s2 + $0x8] sm:$0xff]
    %v990 = vld [vmem:[%s2 + $0x10] sm:$0xff]
    %v991 = vld [vmem:[%s2 + $0x18] sm:$0xff]
    %v992 = vld [vmem:[%s2 + $0x20] sm:$0x3f]
    %v993 = vlaneseq
    %v994 = vshrl.u32 %v993, 7
    %v995 = vsub.s32 0, %v994
    %v996 = vrot.slane %v992, %v995
    %v997 = vmul.f32 %v984, %v996
    %v998 = vmul.f32 %v986, %v996
    %v999 = vlaneseq
    %v1000 = vshrl.u32 %v999, 7
    %v1001 = vsub.s32 1, %v1000
    %v1002 = vrot.slane %v992, %v1001
    %1004 = vrot.lane.b32.xlu0 %v1002, 1
    %v1005 = vpop.permute.xlu0 %1004
    %v1007 = vmul.f32 %v984, %v1005
    %v1008 = vmul.f32 %v986, %v1005
    %1011 = vrot.lane.b32.xlu0 %v1007, 127
    %v1012 = vpop.permute.xlu0 %1011
    %1013 = vrot.lane.b32.xlu0 %v1008, 127
    %v1014 = vpop.permute.xlu0 %1013
    %v1017 = vadd.f32 %v997, %v1012
    %v1018 = vadd.f32 %v998, %v1014
    %v1019 = vlaneseq
    %v1020 = vshrl.u32 %v1019, 7
    %v1021 = vsub.s32 2, %v1020
    %v1022 = vrot.slane %v992, %v1021
    %v1023 = vmul.f32 %v984, %v1022
    %v1024 = vmul.f32 %v985, %v1022
    %v1025 = vmul.f32 %v986, %v1022
    %v1026 = vmul.f32 %v987, %v1022
    %v1031 = vrot.slane %v1023, 1
    %v1032 = vrot.slane %v1024, 1
    %v1033 = vsel %vm134, %v1031, %v1032
    %v1034 = vrot.slane %v1025, 1
    %v1035 = vrot.slane %v1026, 1
    %v1036 = vsel %vm134, %v1034, %v1035
    %v1039 = vadd.f32 %v1017, %v1033
    %v1040 = vadd.f32 %v1018, %v1036
    %v1041 = vlaneseq
    %v1042 = vshrl.u32 %v1041, 7
    %v1043 = vsub.s32 3, %v1042
    %v1044 = vrot.slane %v992, %v1043
    %1046 = vrot.lane.b32.xlu0 %v1044, 1
    %v1047 = vpop.permute.xlu0 %1046
    %v1049 = vmul.f32 %v984, %v1047
    %v1050 = vmul.f32 %v985, %v1047
    %v1051 = vmul.f32 %v986, %v1047
    %v1052 = vmul.f32 %v987, %v1047
    %v1057 = vrot.slane %v1049, 1
    %v1058 = vrot.slane %v1050, 1
    %v1059 = vsel %vm134, %v1057, %v1058
    %v1060 = vrot.slane %v1051, 1
    %v1061 = vrot.slane %v1052, 1
    %v1062 = vsel %vm134, %v1060, %v1061
    %1063 = vrot.lane.b32.xlu0 %v1059, 127
    %v1064 = vpop.permute.xlu0 %1063
    %1065 = vrot.lane.b32.xlu0 %v1062, 127
    %v1066 = vpop.permute.xlu0 %1065
    %v1069 = vadd.f32 %v1039, %v1064
    %v1070 = vadd.f32 %v1040, %v1066
    %v1071 = vlaneseq
    %v1072 = vshrl.u32 %v1071, 7
    %v1073 = vsub.s32 4, %v1072
    %v1074 = vrot.slane %v992, %v1073
    %v1075 = vadd.f32 %v1069, %v1074
    %v1076 = vadd.f32 %v1070, %v1074
    %v1077 = vmax.f32 %v1075, 0.0
    %v1078 = vmax.f32 %v1076, 0.0
    %1081 = vrot.lane.b32.xlu0 %v1077, 127
    %v1082 = vpop.permute.xlu0 %1081
    %1083 = vrot.lane.b32.xlu0 %v1078, 127
    %v1084 = vpop.permute.xlu0 %1083
    %v1087 = vmax.f32 %v1077, %v1082
    %v1088 = vmax.f32 %v1078, %v1084
    %1091 = vrot.lane.b32.xlu0 %v1087, 126
    %v1092 = vpop.permute.xlu0 %1091
    %1093 = vrot.lane.b32.xlu0 %v1088, 126
    %v1094 = vpop.permute.xlu0 %1093
    %v1097 = vmax.f32 %v1087, %v1092
    %v1098 = vmax.f32 %v1088, %v1094
    %1101 = vrot.lane.b32.xlu0 %v1097, 125
    %v1102 = vpop.permute.xlu0 %1101
    %1103 = vrot.lane.b32.xlu0 %v1098, 125
    %v1104 = vpop.permute.xlu0 %1103
    %1107 = vrot.lane.b32.xlu0 %v1097, 121
    %v1108 = vpop.permute.xlu0 %1107
    %1109 = vrot.lane.b32.xlu0 %v1098, 121
    %v1110 = vpop.permute.xlu0 %1109
    %1113 = vrot.lane.b32.xlu0 %v1097, 118
    %v1114 = vpop.permute.xlu0 %1113
    %1115 = vrot.lane.b32.xlu0 %v1098, 118
    %v1116 = vpop.permute.xlu0 %1115
    %1119 = vrot.lane.b32.xlu0 %v1097, 114
    %v1120 = vpop.permute.xlu0 %1119
    %1121 = vrot.lane.b32.xlu0 %v1098, 114
    %v1122 = vpop.permute.xlu0 %1121
    %1125 = vrot.lane.b32.xlu0 %v1097, 111
    %v1126 = vpop.permute.xlu0 %1125
    %1127 = vrot.lane.b32.xlu0 %v1098, 111
    %v1128 = vpop.permute.xlu0 %1127
    %1131 = vrot.lane.b32.xlu0 %v1097, 107
    %v1132 = vpop.permute.xlu0 %1131
    %1133 = vrot.lane.b32.xlu0 %v1098, 107
    %v1134 = vpop.permute.xlu0 %1133
    %1137 = vrot.lane.b32.xlu0 %v1097, 104
    %v1138 = vpop.permute.xlu0 %1137
    %1139 = vrot.lane.b32.xlu0 %v1098, 104
    %v1140 = vpop.permute.xlu0 %1139
    %1143 = vrot.lane.b32.xlu0 %v1097, 100
    %v1144 = vpop.permute.xlu0 %1143
    %1145 = vrot.lane.b32.xlu0 %v1098, 100
    %v1146 = vpop.permute.xlu0 %1145
    %1149 = vrot.lane.b32.xlu0 %v1097, 97
    %v1150 = vpop.permute.xlu0 %1149
    %1151 = vrot.lane.b32.xlu0 %v1098, 97
    %v1152 = vpop.permute.xlu0 %1151
    %1155 = vrot.lane.b32.xlu0 %v1097, 93
    %v1156 = vpop.permute.xlu0 %1155
    %1157 = vrot.lane.b32.xlu0 %v1098, 93
    %v1158 = vpop.permute.xlu0 %1157
    %1161 = vrot.lane.b32.xlu0 %v1097, 90
    %v1162 = vpop.permute.xlu0 %1161
    %1163 = vrot.lane.b32.xlu0 %v1098, 90
    %v1164 = vpop.permute.xlu0 %1163
    %1167 = vrot.lane.b32.xlu0 %v1097, 86
    %v1168 = vpop.permute.xlu0 %1167
    %1169 = vrot.lane.b32.xlu0 %v1098, 86
    %v1170 = vpop.permute.xlu0 %1169
    %1173 = vrot.lane.b32.xlu0 %v1097, 83
    %v1174 = vpop.permute.xlu0 %1173
    %1175 = vrot.lane.b32.xlu0 %v1098, 83
    %v1176 = vpop.permute.xlu0 %1175
    %1179 = vrot.lane.b32.xlu0 %v1097, 79
    %v1180 = vpop.permute.xlu0 %1179
    %1181 = vrot.lane.b32.xlu0 %v1098, 79
    %v1182 = vpop.permute.xlu0 %1181
    %1185 = vrot.lane.b32.xlu0 %v1097, 76
    %v1186 = vpop.permute.xlu0 %1185
    %1187 = vrot.lane.b32.xlu0 %v1098, 76
    %v1188 = vpop.permute.xlu0 %1187
    %v1191 = vsel %vm625, %v1097, %v1102
    %v1192 = vsel %vm625, %v1098, %v1104
    %v1193 = vsel %vm636, %v1191, %v1108
    %v1194 = vsel %vm636, %v1192, %v1110
    %v1195 = vsel %vm647, %v1193, %v1114
    %v1196 = vsel %vm647, %v1194, %v1116
    %v1197 = vsel %vm658, %v1195, %v1120
    %v1198 = vsel %vm658, %v1196, %v1122
    %v1199 = vsel %vm669, %v1197, %v1126
    %v1200 = vsel %vm669, %v1198, %v1128
    %v1201 = vsel %vm680, %v1199, %v1132
    %v1202 = vsel %vm680, %v1200, %v1134
    %v1203 = vsel %vm691, %v1201, %v1138
    %v1204 = vsel %vm691, %v1202, %v1140
    %v1205 = vsel %vm702, %v1203, %v1144
    %v1206 = vsel %vm702, %v1204, %v1146
    %v1207 = vsel %vm953, %v1205, %v1150
    %v1208 = vsel %vm953, %v1206, %v1152
    %vm1209 = vcmask 80896
    %v1210 = vsel %vm1209, %v1207, %v1156
    %v1211 = vsel %vm1209, %v1208, %v1158
    %vm1212 = vcmask 89088
    %v1213 = vsel %vm1212, %v1210, %v1162
    %v1214 = vsel %vm1212, %v1211, %v1164
    %vm1215 = vcmask 97280
    %v1216 = vsel %vm1215, %v1213, %v1168
    %v1217 = vsel %vm1215, %v1214, %v1170
    %vm1218 = vcmask 105472
    %v1219 = vsel %vm1218, %v1216, %v1174
    %v1220 = vsel %vm1218, %v1217, %v1176
    %vm1221 = vcmask 113664
    %v1222 = vsel %vm1221, %v1219, %v1180
    %v1223 = vsel %vm1221, %v1220, %v1182
    %vm1224 = vcmask 121856
    %v1225 = vsel %vm1224, %v1222, %v1186
    %v1226 = vsel %vm1224, %v1223, %v1188
    %v1229 = vrot.slane %v1225, 1
    %v1230 = vrot.slane %v1226, 1
    %v1233 = vmax.f32 %v1225, %v1229
    %v1234 = vmax.f32 %v1226, %v1230
    %v1237 = vrot.slane %v1233, 2
    %v1238 = vrot.slane %v1234, 2
    %v1241 = vmax.f32 %v1233, %v1237
    %v1242 = vmax.f32 %v1234, %v1238
    %v1245 = vrot.slane %v1242, 7
    %vm1246 = vcmask 1041409
    %v1247 = vsel %vm1246, %v1245, %v1241
    %v1249 = vrot.slane %v1241, 4
    %v1250 = vrot.slane %v1242, 3
    %v1251 = vsel %vm1246, %v1250, %v1249
    %1252 = vrot.lane.b32.xlu0 %v1251, 16
    %v1253 = vpop.permute.xlu0 %1252
    %vm1255 = vcmask 130048
    %v1256 = vsel %vm1255, %v1247, %v1253
    %v1257 = vlaneseq
    %v1258 = vshrl.u32 %v1257, 7
    %v1259 = vsub.s32 5, %v1258
    %v1260 = vrot.slane %v992, %v1259
    %vm1261 = vcmask 261120
    %v1263 = vsel %vm1261, %v1256, 0
    %1265 = vmatprep.subr.mxu0 0.0
    %1266 = vmatpush1.msra.mxu0 %v988
    %1267 = vmatprep.subr.mxu0 0.0
    %1268 = vmatpush1.msra.mxu0 %v989
    %1269 = vmatprep.subr.mxu0 0.0
    %1270 = vmatpush1.msra.mxu0 %v990
    %1271 = vmatprep.subr.mxu0 0.0
    %1272 = vmatpush1.msra.mxu0 %v991
    %1273 = vmatprep.subr.mxu0 0.0
    %1274 = vmatpush1.msra.mxu0 0.0
    %1275 = vmatprep.subr.mxu0 0.0
    %1276 = vmatpush1.msra.mxu0 0.0
    %1277 = vmatprep.subr.mxu0 0.0
    %1278 = vmatpush1.msra.mxu0 0.0
    %1279 = vmatprep.subr.mxu0 0.0
    %1280 = vmatpush1.msra.mxu0 0.0
    %1281 = vmatprep.subr.mxu0 0.0
    %1282 = vmatpush1.msra.mxu0 0.0
    %1283 = vmatprep.subr.mxu0 0.0
    %1284 = vmatpush1.msra.mxu0 0.0
    %1285 = vmatprep.subr.mxu0 0.0
    %1286 = vmatpush1.msra.mxu0 0.0
    %1287 = vmatprep.subr.mxu0 0.0
    %1288 = vmatpush1.msra.mxu0 0.0
    %1289 = vmatprep.subr.mxu0 0.0
    %1290 = vmatpush1.msra.mxu0 0.0
    %1291 = vmatprep.subr.mxu0 0.0
    %1292 = vmatpush1.msra.mxu0 0.0
    %1293 = vmatprep.subr.mxu0 0.0
    %1294 = vmatpush1.msra.mxu0 0.0
    %1295 = vmatprep.subr.mxu0 0.0
    %1296 = vmatpush1.msra.mxu0 0.0
    %1297 = vmatprep.subr.mxu0 0.0
    %1298 = vmatpush1.msra.mxu0 0.0
    %1299 = vmatprep.subr.mxu0 0.0
    %1300 = vmatpush1.msra.mxu0 0.0
    %1301 = vmatprep.subr.mxu0 0.0
    %1302 = vmatpush1.msra.mxu0 0.0
    %1303 = vmatprep.subr.mxu0 0.0
    %1304 = vmatpush1.msra.mxu0 0.0
    %1305 = vmatprep.subr.mxu0 0.0
    %1306 = vmatpush1.msra.mxu0 0.0
    %1307 = vmatprep.subr.mxu0 0.0
    %1308 = vmatpush1.msra.mxu0 0.0
    %1309 = vmatprep.subr.mxu0 0.0
    %1310 = vmatpush1.msra.mxu0 0.0
    %1311 = vmatprep.subr.mxu0 0.0
    %1312 = vmatpush1.msra.mxu0 0.0
    %1313 = vmatprep.subr.mxu0 0.0
    %1314 = vmatpush1.msra.mxu0 0.0
    %1315 = vmatprep.subr.mxu0 0.0
    %1316 = vmatpush1.msra.mxu0 0.0
    %1317 = vmatprep.subr.mxu0 0.0
    %1318 = vmatpush1.msra.mxu0 0.0
    %1319 = vmatprep.subr.mxu0 0.0
    %1320 = vmatpush1.msra.mxu0 0.0
    %1321 = vmatprep.subr.mxu0 0.0
    %1322 = vmatpush1.msra.mxu0 0.0
    %1323 = vmatprep.subr.mxu0 0.0
    %1324 = vmatpush1.msra.mxu0 0.0
    %1325 = vmatprep.subr.mxu0 0.0
    %1326 = vmatpush1.msra.mxu0 0.0
    %1327 = vmatprep.subr.mxu0 0.0
    %1328 = vmatpush1.msra.mxu0 0.0
    %1329 = vmatprep.mubr.f32.mxu0 0.0
    %1330 = vmatmul.mubr.f32.gmra.mrb[0].mxu0 %v1263
    %v1331 = vpop.f32.mrb[0].mxu0
    %v1332 = vadd.f32 %v1260, %v1331
    %v1333 = vpop.f32.mrb[0].mxu0
    %1334 = vdwg.mxu0
    %vm1335 = vcmask 74752
    %1336 = vst.msk [vmem:[#allocation5] sm:$0x3] %vm1335, %v1332
    // Predicated region
    $region18: #{tpu_custom_call.1} parent=1 // pred_check
      _
    $region19: #{tpu_custom_call.1} parent=1 // pred_check_branch
      %1338 = sbr.rel (0) target = $region21
    $region20: #{tpu_custom_call.1} parent=1 // pred_region
      %s1340 = ssub.s32 32, 32
      %1341 = vsyncadd [#allocation3], %s1340
      %s1343 = sshll.u32 [#allocation5], 4
      %s1344 = int_to_ptr.vmem [resolvable:$true] %s1343
      %1346 = dma.vmem_to_hbm [thread:$0]  %s1344, 32, %s3, [#allocation3]
    $region21: #{tpu_custom_call.1} parent=1 // pred_fallthru
      _
    // Predicated region
    $region22: #{tpu_custom_call.1} parent=1 // pred_check
      _
    $region23: #{tpu_custom_call.1} parent=1 // pred_check_branch
      %1348 = sbr.rel (0) target = $region25
    $region24: #{tpu_custom_call.1} parent=1 // pred_region
      %1349 = dma.done [#allocation3], 32
    $region25: #{tpu_custom_call.1} parent=1 // pred_fallthru
      _
    %1350 = vsyncpa [#allocation3], 1
    %1351 = vsyncpa [#allocation4], 1

</llo_original>
